<compile_context>
chip_gen: v7x
topology: tpu7x:2x2x1
jax: 0.10.0
libtpu: 0.0.40
codegen_flags: <defaults>
</compile_context>

<pallas_src>
import functools

import jax
import jax.numpy as jnp
from jax.experimental import pallas as pl
from jax.experimental.pallas import tpu as pltpu


def residual_stack_kernel(x_ref, w1t_ref, b1_ref, w2t_ref, b2_ref, o_ref):
    """One batch tile through L fused residual units.

    x_ref:   (TB, dim_stack)            activations (input dtype)
    w1t_ref: (L, dim_stack, hidden)     linear1 weight, (in, out) layout, bf16
    b1_ref:  (L, 1, hidden)             f32
    w2t_ref: (L, hidden, dim_stack)     linear2 weight, (in, out) layout, bf16
    b2_ref:  (L, 1, dim_stack)          f32
    o_ref:   (TB, dim_stack)
    """
    n_layers = w1t_ref.shape[0]
    x = x_ref[...].astype(jnp.float32)                      # carry stays in f32
    # Static unroll over layers (L is small); activations never leave vregs/VMEM.
    for l in range(n_layers):
        w1t = w1t_ref[l]                                    # (dim_stack, hidden) bf16
        b1 = b1_ref[l]                                      # (1, hidden) f32
        w2t = w2t_ref[l]                                    # (hidden, dim_stack) bf16
        b2 = b2_ref[l]                                      # (1, dim_stack) f32
        # bf16 operands -> single MXU pass per matmul; accumulate in f32.
        h = jnp.dot(x.astype(jnp.bfloat16), w1t,
                    preferred_element_type=jnp.float32) + b1
        y = jnp.dot(h.astype(jnp.bfloat16), w2t,
                    preferred_element_type=jnp.float32) + b2
        x = jnp.maximum(y + x, 0.0)                         # residual add + ReLU (f32, VPU)
    o_ref[...] = x.astype(o_ref.dtype)


def pack_residual_params(layers):
    """Pack PyTorch-layout params ONCE into kernel layout (transpose + bf16 cast).

    layers: list of (w1, b1, w2, b2) with nn.Linear shapes:
        w1: (hidden, dim_stack)  b1: (hidden,)
        w2: (dim_stack, hidden)  b2: (dim_stack,)
    Returns (w1t, b1, w2t, b2) stacked over L; weights (in, out) bf16, biases f32.
    """
    w1t = jnp.stack([jnp.transpose(w1).astype(jnp.bfloat16)
                     for (w1, _, _, _) in layers])                     # (L, dim_stack, hidden)
    b1 = jnp.stack([b1.reshape(1, -1).astype(jnp.float32)
                    for (_, b1, _, _) in layers])                      # (L, 1, hidden)
    w2t = jnp.stack([jnp.transpose(w2).astype(jnp.bfloat16)
                     for (_, _, w2, _) in layers])                     # (L, hidden, dim_stack)
    b2 = jnp.stack([b2.reshape(1, -1).astype(jnp.float32)
                    for (_, _, _, b2) in layers])                      # (L, 1, dim_stack)
    return w1t, b1, w2t, b2


def _choose_tile_batch(B, tile_batch, min_grid):
    """Batch-tile size: multiple of 8 (or == B), <= tile_batch, aiming for >= min_grid tiles."""
    if B <= 8:
        return B
    target = pl.cdiv(B, min_grid)           # tile that would give ~min_grid grid steps
    target = max(8, (target // 8) * 8)      # sublane-granular
    tb = min(tile_batch, target)
    tb = max(8, (tb // 8) * 8)
    return min(tb, B)


@functools.partial(jax.jit, static_argnames=("tile_batch", "min_grid"))
def residual_stack_forward(x, w1t, b1, w2t, b2, *, tile_batch=2048, min_grid=8):
    """Apply L fused residual units to x: (B, dim_stack) -> (B, dim_stack)."""
    B, dim_stack = x.shape
    L, _, hidden = w1t.shape

    tb = _choose_tile_batch(B, tile_batch, min_grid)
    grid = (pl.cdiv(B, tb),)

    # --- VMEM guardrail (v7x: 64 MiB physical, 32 MiB default scoped limit) ---
    padded_ds = pl.cdiv(dim_stack, 128) * 128
    padded_h = pl.cdiv(hidden, 128) * 128
    tile_bytes = tb * padded_ds * 4
    weight_bytes = (L * (padded_ds * padded_h + padded_h * padded_ds) * 2
                    + L * 8 * (padded_h + padded_ds) * 4)
    vmem_needed = 2 * 2 * tile_bytes + weight_bytes + (1 << 20)   # dbl-buffered in+out
    compiler_kwargs = dict(dimension_semantics=("parallel",))
    if vmem_needed > (32 << 20):
        compiler_kwargs["vmem_limit_bytes"] = int(min(vmem_needed, 60 << 20))

    # Advisory cost estimate so XLA can overlap this small kernel with neighbours.
    flops = 2 * B * L * (dim_stack * hidden + hidden * dim_stack)
    bytes_accessed = (2 * B * dim_stack * x.dtype.itemsize
                      + (w1t.size + w2t.size) * 2 + (b1.size + b2.size) * 4)
    cost = pl.CostEstimate(flops=flops, transcendentals=0,
                           bytes_accessed=int(bytes_accessed))

    return pl.pallas_call(
        residual_stack_kernel,
        out_shape=jax.ShapeDtypeStruct((B, dim_stack), x.dtype),
        grid=grid,
        in_specs=[
            # Batch-tiled activations.
            pl.BlockSpec((tb, dim_stack), lambda i: (i, 0)),
            # Weights/biases: same (full) block every grid step -> VMEM-resident.
            pl.BlockSpec((L, dim_stack, hidden), lambda i: (0, 0, 0)),
            pl.BlockSpec((L, 1, hidden), lambda i: (0, 0, 0)),
            pl.BlockSpec((L, hidden, dim_stack), lambda i: (0, 0, 0)),
            pl.BlockSpec((L, 1, dim_stack), lambda i: (0, 0, 0)),
        ],
        out_specs=pl.BlockSpec((tb, dim_stack), lambda i: (i, 0)),
        compiler_params=pltpu.CompilerParams(**compiler_kwargs),
        cost_estimate=cost,
        # TODO(synk): enable input_output_aliases={0: 0} in production when x is dead.
    )(x, w1t, b1, w2t, b2)


def residual_forward(x, packed_params, **kw):
    """Single (or stacked) Residual forward with pre-packed parameters."""
    return residual_stack_forward(x, *packed_params, **kw)


def _reference_stack_f32(x, layers):
    """Pure-JAX f32 reference with PyTorch nn.Linear semantics."""
    y = x
    for (w1, b1, w2, b2) in layers:
        h = y @ w1.T + b1
        z = h @ w2.T + b2
        y = jnp.maximum(z + y, 0.0)
    return y


def _reference_stack_bf16(x, layers):
    """Pure-JAX reference that mirrors the kernel numerics (bf16 dots, f32 accum)."""
    y = x.astype(jnp.float32)
    for (w1, b1, w2, b2) in layers:
        h = jnp.dot(y.astype(jnp.bfloat16), w1.T.astype(jnp.bfloat16),
                    preferred_element_type=jnp.float32) + b1
        z = jnp.dot(h.astype(jnp.bfloat16), w2.T.astype(jnp.bfloat16),
                    preferred_element_type=jnp.float32) + b2
        y = jnp.maximum(z + y, 0.0)
    return y


if __name__ == "__main__":
    key = jax.random.PRNGKey(0)

    # ------------------------------------------------------------------
    # Case 1: single Residual unit — matches the PyTorch module exactly.
    # ------------------------------------------------------------------
    batch, dim_stack, hidden_unit = 8, 32, 64
    k_x, k_w1, k_b1, k_w2, k_b2, key = jax.random.split(key, 6)

    x = jax.random.normal(k_x, (batch, dim_stack), dtype=jnp.float32)
    # PyTorch nn.Linear layout: weight (out, in), bias (out,).
    w1 = jax.random.normal(k_w1, (hidden_unit, dim_stack), dtype=jnp.float32) * 0.1
    b1 = jax.random.normal(k_b1, (hidden_unit,), dtype=jnp.float32) * 0.1
    w2 = jax.random.normal(k_w2, (dim_stack, hidden_unit), dtype=jnp.float32) * 0.1
    b2 = jax.random.normal(k_b2, (dim_stack,), dtype=jnp.float32) * 0.1

    layers1 = [(w1, b1, w2, b2)]
    params1 = pack_residual_params(layers1)          # transposed + bf16-cast once

    out1 = residual_forward(x, params1)
    jax.block_until_ready(out1)
    # Tight check vs a numerics-matched (bf16-dot) reference ...
    ref1_bf16 = _reference_stack_bf16(x, layers1)
    assert jnp.allclose(out1, ref1_bf16, atol=1e-4, rtol=1e-4), "single-unit bf16-ref mismatch"
    # ... and a looser, documented check vs the pure-f32 PyTorch-semantics reference
    # (difference is bf16 operand rounding, not a kernel bug).
    ref1_f32 = _reference_stack_f32(x, layers1)
    assert jnp.allclose(out1, ref1_f32, atol=3e-2, rtol=3e-2), "single-unit f32-ref mismatch"

    # ------------------------------------------------------------------
    # Case 2: fused 3-unit stack, multi-tile batch grid with weights
    # VMEM-resident (exercises the tiled / parallel path).
    # ------------------------------------------------------------------
    n_layers, batch2 = 3, 64
    k_x2, key = jax.random.split(key, 2)
    x2 = jax.random.normal(k_x2, (batch2, dim_stack), dtype=jnp.float32)

    layers2 = []
    for _ in range(n_layers):
        k1, k2, k3, k4, key = jax.random.split(key, 5)
        layers2.append((
            jax.random.normal(k1, (hidden_unit, dim_stack), dtype=jnp.float32) * 0.1,
            jax.random.normal(k2, (hidden_unit,), dtype=jnp.float32) * 0.1,
            jax.random.normal(k3, (dim_stack, hidden_unit), dtype=jnp.float32) * 0.1,
            jax.random.normal(k4, (dim_stack,), dtype=jnp.float32) * 0.1,
        ))
    params2 = pack_residual_params(layers2)

    out2 = residual_stack_forward(x2, *params2, tile_batch=16, min_grid=4)  # 4 batch tiles
    jax.block_until_ready(out2)
    ref2_bf16 = _reference_stack_bf16(x2, layers2)
    assert jnp.allclose(out2, ref2_bf16, atol=1e-4, rtol=1e-4), "fused-stack bf16-ref mismatch"
    ref2_f32 = _reference_stack_f32(x2, layers2)
    assert jnp.allclose(out2, ref2_f32, atol=3e-2, rtol=3e-2), "fused-stack f32-ref mismatch"

    print("KERNEL_OK")
</pallas_src>

<mosaic_0001>
module attributes {stable_mosaic.version = 11 : i64} {
  func.func @residual_stack_kernel(%arg0: i32, %arg1: memref<8x32xf32, #tpu.memory_space<vmem>>, %arg2: memref<1x32x64xbf16, #tpu.memory_space<vmem>>, %arg3: memref<1x1x64xf32, #tpu.memory_space<vmem>>, %arg4: memref<1x64x32xbf16, #tpu.memory_space<vmem>>, %arg5: memref<1x1x32xf32, #tpu.memory_space<vmem>>, %arg6: memref<8x32xf32, #tpu.memory_space<vmem>>) attributes {dimension_semantics = [#tpu.dimension_semantics<parallel>], iteration_bounds = array<i64: 1>, scalar_prefetch = 0 : i64, scratch_operands = 0 : i64, tpu.core_type = #tpu.core_type<tc>, window_params = [{transform_indices = @transform_0, window_bounds = array<i64: 8, 32>}, {pipeline_mode = #tpu.pipeline_mode<synchronous>, transform_indices = @transform_1, window_bounds = array<i64: 1, 32, 64>}, {pipeline_mode = #tpu.pipeline_mode<synchronous>, transform_indices = @transform_2, window_bounds = array<i64: 1, 1, 64>}, {pipeline_mode = #tpu.pipeline_mode<synchronous>, transform_indices = @transform_3, window_bounds = array<i64: 1, 64, 32>}, {pipeline_mode = #tpu.pipeline_mode<synchronous>, transform_indices = @transform_4, window_bounds = array<i64: 1, 1, 32>}, {transform_indices = @transform_5, window_bounds = array<i64: 8, 32>}]} {
    %c0 = arith.constant 0 : index
    %c0_0 = arith.constant 0 : index
    %0 = vector.load %arg1[%c0, %c0_0] : memref<8x32xf32, #tpu.memory_space<vmem>>, vector<8x32xf32>
    %c0_1 = arith.constant 0 : index
    %c0_2 = arith.constant 0 : index
    %c0_3 = arith.constant 0 : index
    %1 = vector.load %arg2[%c0_1, %c0_2, %c0_3] : memref<1x32x64xbf16, #tpu.memory_space<vmem>>, vector<1x32x64xbf16>
    %2 = vector.shape_cast %1 : vector<1x32x64xbf16> to vector<32x64xbf16>
    %c0_4 = arith.constant 0 : index
    %c0_5 = arith.constant 0 : index
    %c0_6 = arith.constant 0 : index
    %3 = vector.load %arg3[%c0_4, %c0_5, %c0_6] : memref<1x1x64xf32, #tpu.memory_space<vmem>>, vector<1x1x64xf32>
    %4 = vector.shape_cast %3 : vector<1x1x64xf32> to vector<1x64xf32>
    %c0_7 = arith.constant 0 : index
    %c0_8 = arith.constant 0 : index
    %c0_9 = arith.constant 0 : index
    %5 = vector.load %arg4[%c0_7, %c0_8, %c0_9] : memref<1x64x32xbf16, #tpu.memory_space<vmem>>, vector<1x64x32xbf16>
    %6 = vector.shape_cast %5 : vector<1x64x32xbf16> to vector<64x32xbf16>
    %c0_10 = arith.constant 0 : index
    %c0_11 = arith.constant 0 : index
    %c0_12 = arith.constant 0 : index
    %7 = vector.load %arg5[%c0_10, %c0_11, %c0_12] : memref<1x1x32xf32, #tpu.memory_space<vmem>>, vector<1x1x32xf32>
    %8 = vector.shape_cast %7 : vector<1x1x32xf32> to vector<1x32xf32>
    %9 = arith.truncf %0 : vector<8x32xf32> to vector<8x32xbf16>
    %cst = arith.constant dense<0.000000e+00> : vector<8x64xf32>
    %10 = tpu.matmul %9, %2, %cst {dimension_numbers = #tpu.dot_dimension_numbers<[1], [0], [0], [1], [0, 0, 1, 1], [], []>} : vector<8x32xbf16>, vector<32x64xbf16>, vector<8x64xf32> -> vector<8x64xf32>
    %11 = vector.broadcast %4 : vector<1x64xf32> to vector<8x64xf32>
    %12 = arith.addf %10, %11 : vector<8x64xf32>
    %13 = arith.truncf %12 : vector<8x64xf32> to vector<8x64xbf16>
    %cst_13 = arith.constant dense<0.000000e+00> : vector<8x32xf32>
    %14 = tpu.matmul %13, %6, %cst_13 {dimension_numbers = #tpu.dot_dimension_numbers<[1], [0], [0], [1], [0, 0, 1, 1], [], []>} : vector<8x64xbf16>, vector<64x32xbf16>, vector<8x32xf32> -> vector<8x32xf32>
    %15 = vector.broadcast %8 : vector<1x32xf32> to vector<8x32xf32>
    %16 = arith.addf %14, %15 : vector<8x32xf32>
    %17 = arith.addf %16, %0 : vector<8x32xf32>
    %cst_14 = arith.constant 0.000000e+00 : f32
    %18 = vector.broadcast %cst_14 : f32 to vector<8x32xf32>
    %19 = arith.maximumf %17, %18 : vector<8x32xf32>
    %c0_15 = arith.constant 0 : index
    %c0_16 = arith.constant 0 : index
    %20 = vector.load %arg6[%c0_15, %c0_16] : memref<8x32xf32, #tpu.memory_space<vmem>>, vector<8x32xf32>
    tpu.vector_store %arg6[%c0_15, %c0_16], %19 {strides = array<i32>} : memref<8x32xf32, #tpu.memory_space<vmem>>, vector<8x32xf32>,
    return
  }
  func.func @transform_0(%arg0: i32) -> (i32, i32) {
    %c0_i32 = arith.constant 0 : i32
    %c0_i32_0 = arith.constant 0 : i32
    return %arg0, %c0_i32 : i32, i32
  }
  func.func @transform_1(%arg0: i32) -> (i32, i32, i32) {
    %c0_i32 = arith.constant 0 : i32
    %c0_i32_0 = arith.constant 0 : i32
    %c0_i32_1 = arith.constant 0 : i32
    %c0_i32_2 = arith.constant 0 : i32
    return %c0_i32, %c0_i32_0, %c0_i32_1 : i32, i32, i32
  }
  func.func @transform_2(%arg0: i32) -> (i32, i32, i32) {
    %c0_i32 = arith.constant 0 : i32
    %c0_i32_0 = arith.constant 0 : i32
    %c0_i32_1 = arith.constant 0 : i32
    %c0_i32_2 = arith.constant 0 : i32
    return %c0_i32, %c0_i32_0, %c0_i32_1 : i32, i32, i32
  }
  func.func @transform_3(%arg0: i32) -> (i32, i32, i32) {
    %c0_i32 = arith.constant 0 : i32
    %c0_i32_0 = arith.constant 0 : i32
    %c0_i32_1 = arith.constant 0 : i32
    %c0_i32_2 = arith.constant 0 : i32
    return %c0_i32, %c0_i32_0, %c0_i32_1 : i32, i32, i32
  }
  func.func @transform_4(%arg0: i32) -> (i32, i32, i32) {
    %c0_i32 = arith.constant 0 : i32
    %c0_i32_0 = arith.constant 0 : i32
    %c0_i32_1 = arith.constant 0 : i32
    %c0_i32_2 = arith.constant 0 : i32
    return %c0_i32, %c0_i32_0, %c0_i32_1 : i32, i32, i32
  }
  func.func @transform_5(%arg0: i32) -> (i32, i32) {
    %c0_i32 = arith.constant 0 : i32
    %c0_i32_0 = arith.constant 0 : i32
    return %arg0, %c0_i32 : i32, i32
  }
}

</mosaic_0001>

<llo_original>
// kernel: residual_stack_forward.1
$region0: #{residual_stack_forward.1}
  #allocation0 [shape = 'u32[]', space=smem, size = 0x4, offset = 0x4, fixed_abs, tag = 'smem constant byte address 0x4 - core index']
  #allocation1 [shape = 'u32[144,128]{1,0:T(1,128)}', space=vmem, size = 0x12000, scoped, tag = 'internal scratch']
  %s0 = inlined_call_operand.vmem [shape: f32[8,32], index: 0, kind: input, shape index: {}]
  %s1 = inlined_call_operand.vmem [shape: bf16[1,32,64], index: 1, kind: input, shape index: {}]
  %s2 = inlined_call_operand.vmem [shape: f32[1,1,64], index: 2, kind: input, shape index: {}]
  %s3 = inlined_call_operand.vmem [shape: bf16[1,64,32], index: 3, kind: input, shape index: {}]
  %s4 = inlined_call_operand.vmem [shape: f32[1,1,32], index: 4, kind: input, shape index: {}]
  %s5 = inlined_call_operand.hbm [shape: f32[8,32], index: 5, kind: output, shape index: {}]
  %s6 = sld [smem:[#allocation0]]
  $region30: #{residual_stack_forward.1} parent=0
    _
  %s8 = ssub.s32 1, %s6
  %s9 = scalar_select 0, %s8, %s6
  $region1: #{residual_stack_forward.1} parent=0
    #allocation2 [shape = 'u8[4096]{0}', space=vmem, size = 0x1000, scoped, tag = 'output window, operand 0, single buffered']
    #allocation3 [shape = 's32[1]{0}', space=sflag, size = 0x4, scoped, tag = 'scoped memory for residual_stack_forward.1']
    %10 = vsyncpa [#allocation3], 0
    // Predicated region
    $region2: #{residual_stack_forward.1} parent=1 // pred_check
      _
    $region3: #{residual_stack_forward.1} parent=1 // pred_check_branch
      %12 = sbr.rel (0) target = $region5
    $region4: #{residual_stack_forward.1} parent=1 // pred_region
      _
    $region5: #{residual_stack_forward.1} parent=1 // pred_fallthru
      _
    // Predicated region
    $region6: #{residual_stack_forward.1} parent=1 // pred_check
      _
    $region7: #{residual_stack_forward.1} parent=1 // pred_check_branch
      %14 = sbr.rel (0) target = $region9
    $region8: #{residual_stack_forward.1} parent=1 // pred_region
      _
    $region9: #{residual_stack_forward.1} parent=1 // pred_fallthru
      _
    // Predicated region
    $region10: #{residual_stack_forward.1} parent=1 // pred_check
      _
    $region11: #{residual_stack_forward.1} parent=1 // pred_check_branch
      %16 = sbr.rel (0) target = $region13
    $region12: #{residual_stack_forward.1} parent=1 // pred_region
      _
    $region13: #{residual_stack_forward.1} parent=1 // pred_fallthru
      _
    // Predicated region
    $region14: #{residual_stack_forward.1} parent=1 // pred_check
      _
    $region15: #{residual_stack_forward.1} parent=1 // pred_check_branch
      %18 = sbr.rel (0) target = $region17
    $region16: #{residual_stack_forward.1} parent=1 // pred_region
      _
    $region17: #{residual_stack_forward.1} parent=1 // pred_fallthru
      _
    // Predicated region
    $region18: #{residual_stack_forward.1} parent=1 // pred_check
      _
    $region19: #{residual_stack_forward.1} parent=1 // pred_check_branch
      %20 = sbr.rel (0) target = $region21
    $region20: #{residual_stack_forward.1} parent=1 // pred_region
      _
    $region21: #{residual_stack_forward.1} parent=1 // pred_fallthru
      _
    %v22 = vld [vmem:[%s0] sm:$0xff]
    %v23 = vld [vmem:[%s1] sm:$0xf]
    %v24 = vld [vmem:[%s1 + $0x4] sm:$0xf]
    %v25 = vld [vmem:[%s1 + $0x8] sm:$0xf]
    %v26 = vld [vmem:[%s1 + $0xc] sm:$0xf]
    %v27 = vld [vmem:[%s2] sm:$0x1]
    %v28 = vld [vmem:[%s3] sm:$0xf]
    %v29 = vld [vmem:[%s3 + $0x4] sm:$0xf]
    %v30 = vld [vmem:[%s3 + $0x8] sm:$0xf]
    %v31 = vld [vmem:[%s3 + $0xc] sm:$0xf]
    %v32 = vld [vmem:[%s3 + $0x10] sm:$0xf]
    %v33 = vld [vmem:[%s3 + $0x14] sm:$0xf]
    %v34 = vld [vmem:[%s3 + $0x18] sm:$0xf]
    %v35 = vld [vmem:[%s3 + $0x1c] sm:$0xf]
    %v36 = vld [vmem:[%s4] sm:$0x1]
    %v37 = vpack.c.bf16 %v22, %v22
    %v39 = vlaneseq
    %v40 = vshrl.u32 %v39, 7
    %v41 = vsub.s32 0, %v40
    %v42 = vrot.slane %v27, %v41
    %v48 = vunpack.c.l.b16 %v23
    %v49 = vunpack.c.l.b16 %v24
    %v50 = vunpack.c.l.b16 %v25
    %v51 = vunpack.c.l.b16 %v26
    %v52 = vpack.c.b16 %v49, %v48
    %v53 = vpack.c.b16 %v51, %v50
    %vm56 = vcmask 261120
    %v58 = vsel %vm56, %v37, 0
    %60 = vmatprep.subr.bf16.mxu0 0
    %61 = vmatpush1.bf16.msra.mxu0 %v52
    %62 = vmatprep.subr.bf16.mxu0 0
    %63 = vmatpush1.bf16.msra.mxu0 %v53
    %64 = vmatprep.subr.bf16.mxu0 0
    %65 = vmatpush1.bf16.msra.mxu0 0
    %66 = vmatprep.subr.bf16.mxu0 0
    %67 = vmatpush1.bf16.msra.mxu0 0
    %68 = vmatprep.subr.bf16.mxu0 0
    %69 = vmatpush1.bf16.msra.mxu0 0
    %70 = vmatprep.subr.bf16.mxu0 0
    %71 = vmatpush1.bf16.msra.mxu0 0
    %72 = vmatprep.subr.bf16.mxu0 0
    %73 = vmatpush1.bf16.msra.mxu0 0
    %74 = vmatprep.subr.bf16.mxu0 0
    %75 = vmatpush1.bf16.msra.mxu0 0
    %76 = vmatprep.subr.bf16.mxu0 0
    %77 = vmatpush1.bf16.msra.mxu0 0
    %78 = vmatprep.subr.bf16.mxu0 0
    %79 = vmatpush1.bf16.msra.mxu0 0
    %80 = vmatprep.subr.bf16.mxu0 0
    %81 = vmatpush1.bf16.msra.mxu0 0
    %82 = vmatprep.subr.bf16.mxu0 0
    %83 = vmatpush1.bf16.msra.mxu0 0
    %84 = vmatprep.subr.bf16.mxu0 0
    %85 = vmatpush1.bf16.msra.mxu0 0
    %86 = vmatprep.subr.bf16.mxu0 0
    %87 = vmatpush1.bf16.msra.mxu0 0
    %88 = vmatprep.subr.bf16.mxu0 0
    %89 = vmatpush1.bf16.msra.mxu0 0
    %90 = vmatprep.subr.bf16.mxu0 0
    %91 = vmatpush1.bf16.msra.mxu0 0
    %92 = vmatprep.mubr.bf16.mxu0 0
    %93 = vmatmul.mubr.bf16.gmra.mrb[0].mxu0 %v58
    %v94 = vpop.f32.mrb[0].mxu0
    %v95 = vadd.f32 %v42, %v94
    %v96 = vpop.f32.mrb[0].mxu0
    %v97 = vpop.f32.mrb[0].mxu0
    %v98 = vpop.f32.mrb[0].mxu0
    %99 = vdwg.mxu0
    %v100 = vpack.c.bf16 %v95, %v95
    %v102 = vlaneseq
    %v103 = vshrl.u32 %v102, 7
    %v104 = vsub.s32 0, %v103
    %v105 = vrot.slane %v36, %v104
    %v115 = vunpack.c.l.b16 %v28
    %v116 = vunpack.c.l.b16 %v29
    %v117 = vunpack.c.l.b16 %v30
    %v118 = vunpack.c.l.b16 %v31
    %v119 = vunpack.c.l.b16 %v32
    %v120 = vunpack.c.l.b16 %v33
    %v121 = vunpack.c.l.b16 %v34
    %v122 = vunpack.c.l.b16 %v35
    %v123 = vpack.c.b16 %v116, %v115
    %v124 = vpack.c.b16 %v118, %v117
    %v125 = vpack.c.b16 %v120, %v119
    %v126 = vpack.c.b16 %v122, %v121
    %vm131 = vcmask 523264
    %v133 = vsel %vm131, %v100, 0
    %135 = vmatprep.subr.bf16.mxu0 0
    %136 = vmatpush1.bf16.msra.mxu0 %v123
    %137 = vmatprep.subr.bf16.mxu0 0
    %138 = vmatpush1.bf16.msra.mxu0 %v124
    %139 = vmatprep.subr.bf16.mxu0 0
    %140 = vmatpush1.bf16.msra.mxu0 %v125
    %141 = vmatprep.subr.bf16.mxu0 0
    %142 = vmatpush1.bf16.msra.mxu0 %v126
    %143 = vmatprep.subr.bf16.mxu0 0
    %144 = vmatpush1.bf16.msra.mxu0 0
    %145 = vmatprep.subr.bf16.mxu0 0
    %146 = vmatpush1.bf16.msra.mxu0 0
    %147 = vmatprep.subr.bf16.mxu0 0
    %148 = vmatpush1.bf16.msra.mxu0 0
    %149 = vmatprep.subr.bf16.mxu0 0
    %150 = vmatpush1.bf16.msra.mxu0 0
    %151 = vmatprep.subr.bf16.mxu0 0
    %152 = vmatpush1.bf16.msra.mxu0 0
    %153 = vmatprep.subr.bf16.mxu0 0
    %154 = vmatpush1.bf16.msra.mxu0 0
    %155 = vmatprep.subr.bf16.mxu0 0
    %156 = vmatpush1.bf16.msra.mxu0 0
    %157 = vmatprep.subr.bf16.mxu0 0
    %158 = vmatpush1.bf16.msra.mxu0 0
    %159 = vmatprep.subr.bf16.mxu0 0
    %160 = vmatpush1.bf16.msra.mxu0 0
    %161 = vmatprep.subr.bf16.mxu0 0
    %162 = vmatpush1.bf16.msra.mxu0 0
    %163 = vmatprep.subr.bf16.mxu0 0
    %164 = vmatpush1.bf16.msra.mxu0 0
    %165 = vmatprep.subr.bf16.mxu0 0
    %166 = vmatpush1.bf16.msra.mxu0 0
    %167 = vmatprep.mubr.bf16.mxu0 0
    %168 = vmatmul.mubr.bf16.gmra.mrb[0].mxu0 %v133
    %v169 = vpop.f32.mrb[0].mxu0
    %v170 = vadd.f32 %v105, %v169
    %v171 = vpop.f32.mrb[0].mxu0
    %v172 = vpop.f32.mrb[0].mxu0
    %v173 = vpop.f32.mrb[0].mxu0
    %174 = vdwg.mxu0
    %v175 = vadd.f32 %v170, %v22
    %v176 = vmax.f32 %v175, 0.0
    %177 = vst.msk [vmem:[#allocation2] sm:$0xff] %vm56, %v176
    // Predicated region
    $region22: #{residual_stack_forward.1} parent=1 // pred_check
      _
    $region23: #{residual_stack_forward.1} parent=1 // pred_check_branch
      %179 = sbr.rel (0) target = $region25
    $region24: #{residual_stack_forward.1} parent=1 // pred_region
      %s181 = ssub.s32 128, 128
      %182 = vsyncadd [#allocation3], %s181
      %s184 = sshll.u32 [#allocation2], 4
      %s185 = int_to_ptr.vmem [resolvable:$true] %s184
      %187 = dma.vmem_to_hbm [thread:$0]  %s185, 128, %s5, [#allocation3]
    $region25: #{residual_stack_forward.1} parent=1 // pred_fallthru
      _
    // Predicated region
    $region26: #{residual_stack_forward.1} parent=1 // pred_check
      _
    $region27: #{residual_stack_forward.1} parent=1 // pred_check_branch
      %189 = sbr.rel (0) target = $region29
    $region28: #{residual_stack_forward.1} parent=1 // pred_region
      %190 = dma.done [#allocation3], 128
    $region29: #{residual_stack_forward.1} parent=1 // pred_fallthru
      _
    %191 = vsyncpa [#allocation3], 1

</llo_original>
